<compile_context>
chip_gen: v5e
topology: v5e:2x2
jax: 0.10.0
libtpu: 0.0.40
codegen_flags: <defaults>
</compile_context>

<pallas_src>
import functools

import jax
import jax.numpy as jnp
from jax.experimental import pallas as pl
from jax.experimental.pallas import tpu as pltpu


def _round_up(a, m):
    return ((a + m - 1) // m) * m


def _vmem_limit_bytes():
    """Per-generation scoped VMEM limit (75% of physical, capped, with safe fallback)."""
    try:
        cap = int(pltpu.get_tpu_info().vmem_capacity_bytes)
    except Exception:  # off-TPU / older runtime: conservative default
        cap = 64 * 1024 * 1024
    return max(32 * 1024 * 1024, min(cap * 3 // 4, 96 * 1024 * 1024))


def _auto_pos_tile(bt, kc, nkc, lout_max, vmem_budget_bytes):
    """Largest position tile whose per-step footprint fits the budget."""
    lout_pad = _round_up(lout_max, 8)
    for lt in (1024, 512, 256, 128, 64, 32, 16, 8):
        if lt > lout_pad:
            continue
        need = (2 * bt * lt * kc * 2     # double-buffered bf16 patch blocks
                + 2 * kc * nkc * 2       # packed bf16 conv weight (counted 2x, conservative)
                + bt * lt * nkc * 4      # f32 matmul intermediate before the max
                + (1 << 20))             # slack (bias / valid-len / output blocks)
        if need <= vmem_budget_bytes:
            return lt
    return 8


# --------------------------------------------------------------------------------------
# Kernel A: shared-im2col conv (one GEMM) + masked running global max pool (+ bias at end)
# --------------------------------------------------------------------------------------
def _conv_pool_kernel(patch_ref, w_ref, b_ref, valid_ref, feat_ref):
    """Grid = (batch_tile b [parallel], position_tile l [arbitrary reduction]).

    patch_ref: [bt, lt, Kc]  shared im2col patches (bf16), depth kmax*c_in zero-padded to Kc
    w_ref:     [Kc, NKC]     all kernels' flattened weights concat along out-channels (bf16)
    b_ref:     [1, NKC]      conv biases (f32)
    valid_ref: [1, NKC]      per-column count of valid conv positions (int32)
    feat_ref:  [bt, NKC]     running global max, resident across l
    """
    l = pl.program_id(1)
    bt, lt, kc = patch_ref.shape
    nkc = w_ref.shape[1]

    # One collapsed [bt*lt, Kc] x [Kc, NKC] bf16 GEMM with f32 accumulation.
    acc = jnp.dot(patch_ref[...].reshape(bt * lt, kc), w_ref[...],
                  preferred_element_type=jnp.float32).reshape(bt, lt, nkc)

    # Mask positions that are not valid conv outputs for that column's kernel size
    # (covers both the smaller-kernel tails and the zero-padded position tail).
    pos = l * lt + jax.lax.broadcasted_iota(jnp.int32, (lt, nkc), 0)
    mask = (pos < valid_ref[...])[None]                       # [1, lt, NKC]
    chunk_max = jnp.max(jnp.where(mask, acc, -jnp.inf), axis=1)   # [bt, NKC]

    @pl.when(l == 0)
    def _init():
        feat_ref[...] = chunk_max

    @pl.when(l > 0)
    def _update():
        feat_ref[...] = jnp.maximum(feat_ref[...], chunk_max)

    @pl.when(l == pl.num_programs(1) - 1)
    def _finalize():
        # Per-channel bias commutes with the positional max -> add once at the end.
        feat_ref[...] = feat_ref[...] + b_ref[...]


# --------------------------------------------------------------------------------------
# Kernel C: the three fc (+ReLU) hidden features, written as one concatenated [B, 3H] block
# --------------------------------------------------------------------------------------
def _hidden_kernel(hidden_dim, feat_ref, net_ref, desc_ref,
                   wseq_ref, bseq_ref, wnet_ref, bnet_ref, wdesc_ref, bdesc_ref,
                   hid_ref):
    h = hidden_dim

    def fc_relu(x_ref, w_ref, b_ref):
        y = jnp.dot(x_ref[...].astype(jnp.bfloat16), w_ref[...],
                    preferred_element_type=jnp.float32) + b_ref[...]
        return jnp.maximum(y, 0.0)

    # Feature concat order matches the module: ('seqs', 'network', 'description').
    hid_ref[:, 0:h] = fc_relu(feat_ref, wseq_ref, bseq_ref)
    hid_ref[:, h:2 * h] = fc_relu(net_ref, wnet_ref, bnet_ref)
    hid_ref[:, 2 * h:3 * h] = fc_relu(desc_ref, wdesc_ref, bdesc_ref)


# --------------------------------------------------------------------------------------
# Kernel B: cat2emb head, class-tiled over text_dim (weights streamed tile-by-tile)
# --------------------------------------------------------------------------------------
def _head_kernel(hid_ref, wcat_ref, bcat_ref, out_ref):
    out_ref[...] = (jnp.dot(hid_ref[...], wcat_ref[...],
                            preferred_element_type=jnp.float32) + bcat_ref[...])


# --------------------------------------------------------------------------------------
# Wrapper
# --------------------------------------------------------------------------------------
def base_data_encoder_forward(x_ncw, x_description, x_vector, params, *,
                              pos_tile=None, class_tile=None, batch_tile=None):
    """x_ncw: [B, C_in, L] (PyTorch NCW); x_description: [B, Dd]; x_vector: [B, Dn]."""
    kernels = tuple(params["kernels"])
    nk = len(kernels)
    B, c_in, L = x_ncw.shape
    c_out = params["conv_w"][0].shape[-1]
    H = params["fc_seq_w"].shape[1]
    T = params["cat2emb_w"].shape[1]
    kmax = max(kernels)
    if kmax > L:
        raise ValueError("every conv kernel size must be <= seq_length")

    nkc = nk * c_out                               # concatenated pooled-feature width
    kc = _round_up(kmax * c_in, 128)               # shared, lane-dense contraction depth
    lout_max = L - min(kernels) + 1

    vmem_limit = _vmem_limit_bytes()

    bt = batch_tile if batch_tile is not None else (8 if B % 8 == 0 else B)
    if B % bt != 0:
        raise ValueError("batch must be divisible by batch_tile")
    if pos_tile is None:
        lt = _auto_pos_tile(bt, kc, nkc, lout_max, vmem_limit // 2)
    else:
        if pos_tile % 8 != 0:
            raise ValueError("pos_tile must be a multiple of 8 (sublane)")
        lt = min(pos_tile, _round_up(lout_max, 8))
    lp = _round_up(lout_max, lt)                   # padded position extent

    if class_tile is None:
        class_tile = next((c for c in (1024, 512, 256, 128) if T % c == 0), T)
    if T % class_tile != 0:
        raise ValueError("text_dim must be divisible by class_tile")

    # ---- shared im2col (built once; each kernel's weight is a zero-padded prefix) ----
    x_blc = jnp.transpose(x_ncw, (0, 2, 1))                         # [B, L, C_in]
    x_pad = jnp.pad(x_blc, ((0, 0), (0, lp + kmax - 1 - L), (0, 0)))  # zeros; masked in-kernel
    patches = jnp.concatenate([x_pad[:, dk:dk + lp, :] for dk in range(kmax)], axis=-1)
    patches = jnp.pad(patches, ((0, 0), (0, 0), (0, kc - kmax * c_in)))
    patches = patches.astype(jnp.bfloat16)                          # [B, Lp, Kc]

    w_cols, b_cols, v_cols = [], [], []
    for k, w, b in zip(kernels, params["conv_w"], params["conv_b"]):
        w_cols.append(jnp.pad(w.reshape(k * c_in, c_out), ((0, kc - k * c_in), (0, 0))))
        b_cols.append(b.reshape(1, c_out))
        v_cols.append(jnp.full((1, c_out), L - k + 1, jnp.int32))
    w_packed = jnp.concatenate(w_cols, axis=1).astype(jnp.bfloat16)  # [Kc, NKC]
    b_packed = jnp.concatenate(b_cols, axis=1)                       # [1, NKC] f32
    valid_len = jnp.concatenate(v_cols, axis=1)                      # [1, NKC] int32

    # ---- kernel A: conv + masked running max -------------------------------------
    feat = pl.pallas_call(
        _conv_pool_kernel,
        out_shape=jax.ShapeDtypeStruct((B, nkc), jnp.float32),
        grid=(B // bt, lp // lt),
        in_specs=[
            pl.BlockSpec((bt, lt, kc), lambda b, l: (b, l, 0)),
            pl.BlockSpec((kc, nkc), lambda b, l: (0, 0)),
            pl.BlockSpec((1, nkc), lambda b, l: (0, 0)),
            pl.BlockSpec((1, nkc), lambda b, l: (0, 0)),
        ],
        out_specs=pl.BlockSpec((bt, nkc), lambda b, l: (b, 0)),
        compiler_params=pltpu.CompilerParams(
            dimension_semantics=("parallel", "arbitrary"),
            vmem_limit_bytes=vmem_limit),
    )(patches, w_packed, b_packed, valid_len)

    # ---- kernel C: hidden features (fc_seq / fc_network / fc_description + ReLU) --
    dd = x_description.shape[1]
    dn = x_vector.shape[1]
    hidden = pl.pallas_call(
        functools.partial(_hidden_kernel, H),
        out_shape=jax.ShapeDtypeStruct((B, 3 * H), jnp.float32),
        grid=(1,),
        in_specs=[
            pl.BlockSpec((B, nkc), lambda i: (0, 0)),
            pl.BlockSpec((B, dn), lambda i: (0, 0)),
            pl.BlockSpec((B, dd), lambda i: (0, 0)),
            pl.BlockSpec((nkc, H), lambda i: (0, 0)),
            pl.BlockSpec((1, H), lambda i: (0, 0)),
            pl.BlockSpec((dn, H), lambda i: (0, 0)),
            pl.BlockSpec((1, H), lambda i: (0, 0)),
            pl.BlockSpec((dd, H), lambda i: (0, 0)),
            pl.BlockSpec((1, H), lambda i: (0, 0)),
        ],
        out_specs=pl.BlockSpec((B, 3 * H), lambda i: (0, 0)),
        compiler_params=pltpu.CompilerParams(vmem_limit_bytes=vmem_limit),
    )(feat, x_vector, x_description,
      params["fc_seq_w"].astype(jnp.bfloat16), params["fc_seq_b"].reshape(1, H),
      params["fc_net_w"].astype(jnp.bfloat16), params["fc_net_b"].reshape(1, H),
      params["fc_desc_w"].astype(jnp.bfloat16), params["fc_desc_b"].reshape(1, H))

    # ---- kernel B: cat2emb head, class-tiled ("parallel" -> megacore on v7x) ------
    out = pl.pallas_call(
        _head_kernel,
        out_shape=jax.ShapeDtypeStruct((B, T), jnp.float32),
        grid=(T // class_tile,),
        in_specs=[
            pl.BlockSpec((B, 3 * H), lambda j: (0, 0)),
            pl.BlockSpec((3 * H, class_tile), lambda j: (0, j)),
            pl.BlockSpec((1, class_tile), lambda j: (0, j)),
        ],
        out_specs=pl.BlockSpec((B, class_tile), lambda j: (0, j)),
        compiler_params=pltpu.CompilerParams(
            dimension_semantics=("parallel",),
            vmem_limit_bytes=vmem_limit),
    )(hidden.astype(jnp.bfloat16),
      params["cat2emb_w"].astype(jnp.bfloat16),
      params["cat2emb_b"].reshape(1, T))
    return out


# --------------------------------------------------------------------------------------
# Deterministic synthetic parameters (shapes mirror the PyTorch __init__)
# --------------------------------------------------------------------------------------
def init_params(key, *, seq_input_nc, seq_in_nc, seq_max_kernels, seq_length,
                hidden_dim, description_dim, network_dim, text_dim):
    del seq_length  # only the pooling window depends on it, which is implicit here
    kernels = list(range(8, seq_max_kernels, 8))

    def uniform(k, shape, fan_in):
        s = 1.0 / jnp.sqrt(jnp.float32(fan_in))
        return jax.random.uniform(k, shape, jnp.float32, -s, s)

    params = {"kernels": kernels, "conv_w": [], "conv_b": []}
    for k in kernels:
        key, kw, kb = jax.random.split(key, 3)
        fan = seq_input_nc * k
        # stored as [k, C_in, C_out] (= torch Conv1d weight [C_out, C_in, k] transposed)
        params["conv_w"].append(uniform(kw, (k, seq_input_nc, seq_in_nc), fan))
        params["conv_b"].append(uniform(kb, (seq_in_nc,), fan))

    key, k1, k2, k3, k4, k5, k6, k7, k8 = jax.random.split(key, 9)
    f_seq = len(kernels) * seq_in_nc
    params["fc_seq_w"] = uniform(k1, (f_seq, hidden_dim), f_seq)
    params["fc_seq_b"] = uniform(k2, (hidden_dim,), f_seq)
    params["fc_net_w"] = uniform(k3, (network_dim, hidden_dim), network_dim)
    params["fc_net_b"] = uniform(k4, (hidden_dim,), network_dim)
    params["fc_desc_w"] = uniform(k5, (description_dim, hidden_dim), description_dim)
    params["fc_desc_b"] = uniform(k6, (hidden_dim,), description_dim)
    n_feature = 3   # ('seqs', 'network', 'description')
    params["cat2emb_w"] = uniform(k7, (n_feature * hidden_dim, text_dim), n_feature * hidden_dim)
    params["cat2emb_b"] = uniform(k8, (text_dim,), n_feature * hidden_dim)
    return params


# --------------------------------------------------------------------------------------
# Pure-JAX f32 reference (lax.conv) for the correctness check
# --------------------------------------------------------------------------------------
def reference_forward(x_ncw, x_description, x_vector, params):
    relu = lambda v: jnp.maximum(v, 0.0)
    feats = []
    for k, w, b in zip(params["kernels"], params["conv_w"], params["conv_b"]):
        wt = jnp.transpose(w, (2, 1, 0))                    # torch layout [C_out, C_in, k]
        y = jax.lax.conv_general_dilated(
            x_ncw, wt, window_strides=(1,), padding="VALID",
            dimension_numbers=("NCH", "OIH", "NCH"))
        y = y + b.reshape(1, -1, 1)
        feats.append(jnp.max(y, axis=2))                    # global max pool + squeeze
    feat = jnp.concatenate(feats, axis=1)
    h_seq = relu(feat @ params["fc_seq_w"] + params["fc_seq_b"])
    h_net = relu(x_vector @ params["fc_net_w"] + params["fc_net_b"])
    h_desc = relu(x_description @ params["fc_desc_w"] + params["fc_desc_b"])
    cat = jnp.concatenate([h_seq, h_net, h_desc], axis=1)   # ('seqs','network','description')
    return cat @ params["cat2emb_w"] + params["cat2emb_b"]


if __name__ == "__main__":
    # Small shapes consistent with the module: seq_input_nc=4, seq_in_nc=32 (conv
    # out-channels), seq_max_kernels=25 -> kernels [8, 16, 24], seq_length=64,
    # hidden_dim=128, description_dim=64, network_dim=48, text_dim=256, batch=2.
    B = 2
    SEQ_INPUT_NC, SEQ_IN_NC, SEQ_MAX_KERNELS, SEQ_LEN = 4, 32, 25, 64
    HIDDEN_DIM, DESC_DIM, NET_DIM, TEXT_DIM = 128, 64, 48, 256

    key = jax.random.PRNGKey(0)
    key, kx, kd, kv = jax.random.split(key, 4)
    x = jax.random.normal(kx, (B, SEQ_INPUT_NC, SEQ_LEN), jnp.float32)   # PyTorch NCW
    x_description = jax.random.normal(kd, (B, DESC_DIM), jnp.float32)
    x_vector = jax.random.normal(kv, (B, NET_DIM), jnp.float32)

    params = init_params(key, seq_input_nc=SEQ_INPUT_NC, seq_in_nc=SEQ_IN_NC,
                         seq_max_kernels=SEQ_MAX_KERNELS, seq_length=SEQ_LEN,
                         hidden_dim=HIDDEN_DIM, description_dim=DESC_DIM,
                         network_dim=NET_DIM, text_dim=TEXT_DIM)

    # pos_tile=32 -> 2 position tiles (exercises the running max + per-kernel masking);
    # class_tile=128 -> 2 text_dim tiles (exercises the class-tiled weight streaming).
    out = base_data_encoder_forward(x, x_description, x_vector, params,
                                    pos_tile=32, class_tile=128)
    out = jax.block_until_ready(out)

    ref = jax.block_until_ready(reference_forward(x, x_description, x_vector, params))
    assert out.shape == (B, TEXT_DIM)
    # bf16 operand streams (f32 accumulation) -> compare against the f32 reference with
    # a correspondingly looser tolerance.
    max_err = float(jnp.max(jnp.abs(out - ref)))
    assert jnp.allclose(out, ref, atol=5e-2, rtol=5e-2), f"mismatch vs reference: {max_err}"

    print("KERNEL_OK")
</pallas_src>

<mosaic_0001>
module attributes {stable_mosaic.version = 11 : i64} {
  func.func @_conv_pool_kernel(%arg0: i32, %arg1: i32, %arg2: memref<2x32x128xbf16, #tpu.memory_space<vmem>>, %arg3: memref<128x96xbf16, #tpu.memory_space<vmem>>, %arg4: memref<1x96xf32, #tpu.memory_space<vmem>>, %arg5: memref<1x96xi32, #tpu.memory_space<vmem>>, %arg6: memref<2x96xf32, #tpu.memory_space<vmem>>) attributes {dimension_semantics = [#tpu.dimension_semantics<parallel>, #tpu.dimension_semantics<arbitrary>], iteration_bounds = array<i64: 1, 2>, scalar_prefetch = 0 : i64, scratch_operands = 0 : i64, tpu.core_type = #tpu.core_type<tc>, window_params = [{transform_indices = @transform_0, window_bounds = array<i64: 2, 32, 128>}, {pipeline_mode = #tpu.pipeline_mode<synchronous>, transform_indices = @transform_1, window_bounds = array<i64: 128, 96>}, {pipeline_mode = #tpu.pipeline_mode<synchronous>, transform_indices = @transform_2, window_bounds = array<i64: 1, 96>}, {pipeline_mode = #tpu.pipeline_mode<synchronous>, transform_indices = @transform_3, window_bounds = array<i64: 1, 96>}, {transform_indices = @transform_4, window_bounds = array<i64: 2, 96>}]} {
    %c0 = arith.constant 0 : index
    %c0_0 = arith.constant 0 : index
    %c0_1 = arith.constant 0 : index
    %0 = vector.load %arg2[%c0, %c0_0, %c0_1] : memref<2x32x128xbf16, #tpu.memory_space<vmem>>, vector<2x32x128xbf16>
    %1 = vector.shape_cast %0 : vector<2x32x128xbf16> to vector<64x128xbf16>
    %c0_2 = arith.constant 0 : index
    %c0_3 = arith.constant 0 : index
    %2 = vector.load %arg3[%c0_2, %c0_3] : memref<128x96xbf16, #tpu.memory_space<vmem>>, vector<128x96xbf16>
    %cst = arith.constant dense<0.000000e+00> : vector<64x96xf32>
    %3 = tpu.matmul %1, %2, %cst {dimension_numbers = #tpu.dot_dimension_numbers<[1], [0], [0], [1], [0, 0, 1, 1], [], []>} : vector<64x128xbf16>, vector<128x96xbf16>, vector<64x96xf32> -> vector<64x96xf32>
    %4 = vector.shape_cast %3 : vector<64x96xf32> to vector<2x32x96xf32>
    %c32_i32 = arith.constant 32 : i32
    %5 = arith.muli %arg1, %c32_i32 : i32
    %6 = tpu.iota {dimensions = array<i32: 0>} : vector<32x96xi32>
    %7 = vector.broadcast %5 : i32 to vector<32x96xi32>
    %8 = arith.addi %7, %6 : vector<32x96xi32>
    %c0_4 = arith.constant 0 : index
    %c0_5 = arith.constant 0 : index
    %9 = vector.load %arg5[%c0_4, %c0_5] : memref<1x96xi32, #tpu.memory_space<vmem>>, vector<1x96xi32>
    %10 = vector.broadcast %9 : vector<1x96xi32> to vector<32x96xi32>
    %11 = arith.cmpi slt, %8, %10 : vector<32x96xi32>
    %12 = vector.shape_cast %11 : vector<32x96xi1> to vector<1x32x96xi1>
    %cst_6 = arith.constant 0xFF800000 : f32
    %13 = vector.shape_cast %12 : vector<1x32x96xi1> to vector<1x32x96xi1>
    %14 = vector.broadcast %13 : vector<1x32x96xi1> to vector<2x32x96xi1>
    %15 = vector.broadcast %cst_6 : f32 to vector<2x32x96xf32>
    %16 = arith.select %14, %4, %15 : vector<2x32x96xi1>, vector<2x32x96xf32>
    %cst_7 = arith.constant dense<0xFF800000> : vector<2x96xf32>
    %17 = vector.multi_reduction <maximumf>, %16, %cst_7 [1] : vector<2x32x96xf32> to vector<2x96xf32>
    %c0_i32 = arith.constant 0 : i32
    %18 = arith.cmpi eq, %arg1, %c0_i32 : i32
    %19 = arith.extui %18 : i1 to i32
    %c0_i32_8 = arith.constant 0 : i32
    %20 = arith.cmpi ne, %19, %c0_i32_8 : i32
    scf.if %20 {
      %c0_12 = arith.constant 0 : index
      %c0_13 = arith.constant 0 : index
      %27 = vector.load %arg6[%c0_12, %c0_13] : memref<2x96xf32, #tpu.memory_space<vmem>>, vector<2x96xf32>
      tpu.vector_store %arg6[%c0_12, %c0_13], %17 {strides = array<i32>} : memref<2x96xf32, #tpu.memory_space<vmem>>, vector<2x96xf32>,
    } else {
    }
    %c0_i32_9 = arith.constant 0 : i32
    %21 = arith.cmpi sgt, %arg1, %c0_i32_9 : i32
    %22 = arith.extui %21 : i1 to i32
    %c0_i32_10 = arith.constant 0 : i32
    %23 = arith.cmpi ne, %22, %c0_i32_10 : i32
    scf.if %23 {
      %c0_12 = arith.constant 0 : index
      %c0_13 = arith.constant 0 : index
      %27 = vector.load %arg6[%c0_12, %c0_13] : memref<2x96xf32, #tpu.memory_space<vmem>>, vector<2x96xf32>
      %28 = arith.maximumf %27, %17 : vector<2x96xf32>
      %c0_14 = arith.constant 0 : index
      %c0_15 = arith.constant 0 : index
      %29 = vector.load %arg6[%c0_14, %c0_15] : memref<2x96xf32, #tpu.memory_space<vmem>>, vector<2x96xf32>
      tpu.vector_store %arg6[%c0_14, %c0_15], %28 {strides = array<i32>} : memref<2x96xf32, #tpu.memory_space<vmem>>, vector<2x96xf32>,
    } else {
    }
    %c1_i32 = arith.constant 1 : i32
    %24 = arith.cmpi eq, %arg1, %c1_i32 : i32
    %25 = arith.extui %24 : i1 to i32
    %c0_i32_11 = arith.constant 0 : i32
    %26 = arith.cmpi ne, %25, %c0_i32_11 : i32
    scf.if %26 {
      %c0_12 = arith.constant 0 : index
      %c0_13 = arith.constant 0 : index
      %27 = vector.load %arg6[%c0_12, %c0_13] : memref<2x96xf32, #tpu.memory_space<vmem>>, vector<2x96xf32>
      %c0_14 = arith.constant 0 : index
      %c0_15 = arith.constant 0 : index
      %28 = vector.load %arg4[%c0_14, %c0_15] : memref<1x96xf32, #tpu.memory_space<vmem>>, vector<1x96xf32>
      %29 = vector.broadcast %28 : vector<1x96xf32> to vector<2x96xf32>
      %30 = arith.addf %27, %29 : vector<2x96xf32>
      %c0_16 = arith.constant 0 : index
      %c0_17 = arith.constant 0 : index
      %31 = vector.load %arg6[%c0_16, %c0_17] : memref<2x96xf32, #tpu.memory_space<vmem>>, vector<2x96xf32>
      tpu.vector_store %arg6[%c0_16, %c0_17], %30 {strides = array<i32>} : memref<2x96xf32, #tpu.memory_space<vmem>>, vector<2x96xf32>,
    } else {
    }
    return
  }
  func.func @transform_0(%arg0: i32, %arg1: i32) -> (i32, i32, i32) {
    %c0_i32 = arith.constant 0 : i32
    %c0_i32_0 = arith.constant 0 : i32
    return %arg0, %arg1, %c0_i32 : i32, i32, i32
  }
  func.func @transform_1(%arg0: i32, %arg1: i32) -> (i32, i32) {
    %c0_i32 = arith.constant 0 : i32
    %c0_i32_0 = arith.constant 0 : i32
    %c0_i32_1 = arith.constant 0 : i32
    return %c0_i32, %c0_i32_0 : i32, i32
  }
  func.func @transform_2(%arg0: i32, %arg1: i32) -> (i32, i32) {
    %c0_i32 = arith.constant 0 : i32
    %c0_i32_0 = arith.constant 0 : i32
    %c0_i32_1 = arith.constant 0 : i32
    return %c0_i32, %c0_i32_0 : i32, i32
  }
  func.func @transform_3(%arg0: i32, %arg1: i32) -> (i32, i32) {
    %c0_i32 = arith.constant 0 : i32
    %c0_i32_0 = arith.constant 0 : i32
    %c0_i32_1 = arith.constant 0 : i32
    return %c0_i32, %c0_i32_0 : i32, i32
  }
  func.func @transform_4(%arg0: i32, %arg1: i32) -> (i32, i32) {
    %c0_i32 = arith.constant 0 : i32
    %c0_i32_0 = arith.constant 0 : i32
    return %arg0, %c0_i32 : i32, i32
  }
}

</mosaic_0001>

<llo_original>
// kernel: tpu_custom_call.1
$region0: #{tpu_custom_call.1}
  #allocation0 [shape = 'u32[]', space=smem, size = 0x4, offset = 0x4, fixed_abs, tag = 'smem constant byte address 0x4 - core index']
  #allocation1 [shape = 'u32[72,128]{1,0:T(1,128)}', space=vmem, size = 0x9000, scoped, tag = 'internal scratch']
  %s0 = inlined_call_operand.vmem [shape: bf16[2,64,128], index: 0, kind: input, shape index: {}]
  %s1 = inlined_call_operand.vmem [shape: bf16[128,96], index: 1, kind: input, shape index: {}]
  %s2 = inlined_call_operand.vmem [shape: f32[1,96], index: 2, kind: input, shape index: {}]
  %s3 = inlined_call_operand.vmem [shape: s32[1,96], index: 3, kind: input, shape index: {}]
  %s4 = inlined_call_operand.hbm [shape: f32[2,96], index: 4, kind: output, shape index: {}]
  %s5 = sld [smem:[#allocation0]]
  $region102: #{tpu_custom_call.1} parent=0
    _
  %s7 = ssub.s32 1, %s5
  %s8 = scalar_select 0, %s7, %s5
  $region1: #{tpu_custom_call.1} parent=0
    #allocation2 [shape = 'u8[32768]{0}', space=vmem, size = 0x8000, scoped, tag = 'input window, operand 0']
    #allocation3 [shape = 'u8[1024]{0}', space=vmem, size = 0x400, scoped, tag = 'output window, operand 0, single buffered']
    #allocation4 [shape = 's32[2]{0}', space=sflag, size = 0x8, scoped, tag = 'scoped memory for tpu_custom_call.1']
    %9 = vsyncpa [#allocation4], 0
    loop: start=0, step=1, limit=4
    $region2: #{tpu_custom_call.1} parent=1 // loop_pre_header
      _
    $region3: #{tpu_custom_call.1} parent=1 // loop_header
      %s11 = sphi 0, %s15
      %p12 = scmp.ge.s32.totalorder %s11, 4
      %s18 = sphi 0, %s30
      %s19 = sphi 0, %s26
      %s20 = sphi 0, %s18
      %s21 = sphi 0, %s19
      %s22 = sphi 0, %s20
      %s23 = sphi 0, %s21
      %s35 = sphi 0, %s37
      %s38 = sphi 0, %s35
      %s39 = sphi 0, %s38
      %s55 = sphi 0, %s39
      %s59 = sphi 0, %s59
      %s61 = sphi 0, %s59
      %s62 = sphi 0, %s61
      %s76 = sphi 0, %s62
      %s80 = sphi 0, %s80
      %s82 = sphi 0, %s80
      %s83 = sphi 0, %s82
      %s97 = sphi 0, %s83
      %s101 = sphi 0, %s101
      %s103 = sphi 0, %s101
      %s104 = sphi 0, %s103
      %s118 = sphi 0, %s104
      %s124 = sphi 0, %s126
      %s127 = sphi 0, %s124
      %s128 = sphi 0, %s127
      %s144 = sphi 0, %s128
    $region4: #{tpu_custom_call.1} parent=1 // loop_header_branch
      %14 = sbr.rel (%p12) target = $region8
    $region5: #{tpu_custom_call.1} parent=1 // loop_body
      %s16 = ssub.s32 %s11, 1
      %s17 = ssub.s32 %s11, 2
      %s24 = sadd.s32 1, %s19
      %p25 = scmp.ge.s32.totalorder %s24, 2
      %s26 = scalar_select %p25, 0, %s24
      %s27 = sadd.s32 1, %s18
      %s28 = scalar_select %p25, %s27, %s18
      %p29 = scmp.ge.s32.totalorder %s28, 1
      %s30 = scalar_select %p29, 0, %s28
      %s31 = ssub.s32 %s18, %s30
      %s32 = ssub.s32 %s19, %s26
      %s33 = sor.u32 %s31, %s32
      %p34 = scmp.eq.s32.totalorder %s33, 0
      %s36 = sadd.s32 %s35, 1
      %s37 = scalar_select %p34, %s35, %s36
      %p40 = pneg %p34
      %p41 = scmp.eq.s32.totalorder %s11, 1
      %p42 = por %p40, %p41
      %p43 = scmp.ne.s32.totalorder %s35, %s38
      %p44 = scmp.eq.s32.totalorder %s11, 0
      %p45 = por %p43, %p44
      %p46 = scmp.ne.s32.totalorder %s35, %s38
      %p47 = scmp.eq.s32.totalorder %s16, 1
      %p48 = por %p46, %p47
      %p49 = scmp.ne.s32.totalorder %s38, %s39
      %p50 = scmp.eq.s32.totalorder %s16, 0
      %p51 = por %p49, %p50
      %p52 = scmp.ne.s32.totalorder %s38, %s39
      %p53 = scmp.eq.s32.totalorder %s17, 1
      %p54 = por %p52, %p53
      %p56 = scmp.ne.s32.totalorder %s39, %s55
      %p57 = scmp.eq.s32.totalorder %s17, 0
      %p58 = por %p56, %p57
      %s60 = sadd.s32 %s59, 1
      %p63 = scmp.eq.s32.totalorder %s11, 1
      %p64 = scmp.ne.s32.totalorder %s59, %s61
      %p65 = scmp.eq.s32.totalorder %s11, 0
      %p66 = por %p64, %p65
      %p67 = scmp.ne.s32.totalorder %s59, %s61
      %p68 = scmp.eq.s32.totalorder %s16, 1
      %p69 = por %p67, %p68
      %p70 = scmp.ne.s32.totalorder %s61, %s62
      %p71 = scmp.eq.s32.totalorder %s16, 0
      %p72 = por %p70, %p71
      %p73 = scmp.ne.s32.totalorder %s61, %s62
      %p74 = scmp.eq.s32.totalorder %s17, 1
      %p75 = por %p73, %p74
      %p77 = scmp.ne.s32.totalorder %s62, %s76
      %p78 = scmp.eq.s32.totalorder %s17, 0
      %p79 = por %p77, %p78
      %s81 = sadd.s32 %s80, 1
      %p84 = scmp.eq.s32.totalorder %s11, 1
      %p85 = scmp.ne.s32.totalorder %s80, %s82
      %p86 = scmp.eq.s32.totalorder %s11, 0
      %p87 = por %p85, %p86
      %p88 = scmp.ne.s32.totalorder %s80, %s82
      %p89 = scmp.eq.s32.totalorder %s16, 1
      %p90 = por %p88, %p89
      %p91 = scmp.ne.s32.totalorder %s82, %s83
      %p92 = scmp.eq.s32.totalorder %s16, 0
      %p93 = por %p91, %p92
      %p94 = scmp.ne.s32.totalorder %s82, %s83
      %p95 = scmp.eq.s32.totalorder %s17, 1
      %p96 = por %p94, %p95
      %p98 = scmp.ne.s32.totalorder %s83, %s97
      %p99 = scmp.eq.s32.totalorder %s17, 0
      %p100 = por %p98, %p99
      %s102 = sadd.s32 %s101, 1
      %p105 = scmp.eq.s32.totalorder %s11, 1
      %p106 = scmp.ne.s32.totalorder %s101, %s103
      %p107 = scmp.eq.s32.totalorder %s11, 0
      %p108 = por %p106, %p107
      %p109 = scmp.ne.s32.totalorder %s101, %s103
      %p110 = scmp.eq.s32.totalorder %s16, 1
      %p111 = por %p109, %p110
      %p112 = scmp.ne.s32.totalorder %s103, %s104
      %p113 = scmp.eq.s32.totalorder %s16, 0
      %p114 = por %p112, %p113
      %p115 = scmp.ne.s32.totalorder %s103, %s104
      %p116 = scmp.eq.s32.totalorder %s17, 1
      %p117 = por %p115, %p116
      %p119 = scmp.ne.s32.totalorder %s104, %s118
      %p120 = scmp.eq.s32.totalorder %s17, 0
      %p121 = por %p119, %p120
      %s122 = ssub.s32 %s18, %s30
      %p123 = scmp.eq.s32.totalorder %s122, 0
      %s125 = sadd.s32 %s124, 1
      %s126 = scalar_select %p123, %s124, %s125
      %p129 = pneg %p123
      %p130 = scmp.eq.s32.totalorder %s11, 1
      %p131 = por %p129, %p130
      %p132 = scmp.ne.s32.totalorder %s124, %s127
      %p133 = scmp.eq.s32.totalorder %s11, 0
      %p134 = por %p132, %p133
      %p135 = scmp.ne.s32.totalorder %s124, %s127
      %p136 = scmp.eq.s32.totalorder %s16, 1
      %p137 = por %p135, %p136
      %p138 = scmp.ne.s32.totalorder %s127, %s128
      %p139 = scmp.eq.s32.totalorder %s16, 0
      %p140 = por %p138, %p139
      %p141 = scmp.ne.s32.totalorder %s127, %s128
      %p142 = scmp.eq.s32.totalorder %s17, 1
      %p143 = por %p141, %p142
      %p145 = scmp.ne.s32.totalorder %s128, %s144
      %p146 = scmp.eq.s32.totalorder %s17, 0
      %p147 = por %p145, %p146
      %p148 = scmp.le.s32.totalorder 1, %s11
      %p149 = scmp.lt.s32.totalorder %s11, 3
      %p150 = pnand %p148, %p149
      %p151 = pneg %p150
      // Predicated region
      $region9: #{tpu_custom_call.1} parent=5 // pred_check
        _
      $region10: #{tpu_custom_call.1} parent=5 // pred_check_branch
        %153 = sbr.rel (%p150) target = $region12
      $region11: #{tpu_custom_call.1} parent=5 // pred_region
        %s154 = ssub.s32 %s11, 1
        // Predicated region
        $region13: #{tpu_custom_call.1} parent=11 // pred_check
          %p155 = pneg %p72
        $region14: #{tpu_custom_call.1} parent=11 // pred_check_branch
          %157 = sbr.rel (%p155) target = $region16
        $region15: #{tpu_custom_call.1} parent=11 // pred_region
          _
        $region16: #{tpu_custom_call.1} parent=11 // pred_fallthru
          _
        // Predicated region
        $region17: #{tpu_custom_call.1} parent=11 // pred_check
          %p158 = pneg %p93
        $region18: #{tpu_custom_call.1} parent=11 // pred_check_branch
          %160 = sbr.rel (%p158) target = $region20
        $region19: #{tpu_custom_call.1} parent=11 // pred_region
          _
        $region20: #{tpu_custom_call.1} parent=11 // pred_fallthru
          _
        // Predicated region
        $region21: #{tpu_custom_call.1} parent=11 // pred_check
          %p161 = pneg %p114
        $region22: #{tpu_custom_call.1} parent=11 // pred_check_branch
          %163 = sbr.rel (%p161) target = $region24
        $region23: #{tpu_custom_call.1} parent=11 // pred_region
          _
        $region24: #{tpu_custom_call.1} parent=11 // pred_fallthru
          _
      $region12: #{tpu_custom_call.1} parent=5 // pred_fallthru
        _
      %p164 = scmp.lt.s32.totalorder %s11, 2
      // Predicated region
      $region25: #{tpu_custom_call.1} parent=5 // pred_check
        %p165 = pneg %p164
      $region26: #{tpu_custom_call.1} parent=5 // pred_check_branch
        %167 = sbr.rel (%p165) target = $region28
      $region27: #{tpu_custom_call.1} parent=5 // pred_region
        // Predicated region
        $region29: #{tpu_custom_call.1} parent=27 // pred_check
          %p168 = pneg %p45
        $region30: #{tpu_custom_call.1} parent=27 // pred_check_branch
          %170 = sbr.rel (%p168) target = $region32
        $region31: #{tpu_custom_call.1} parent=27 // pred_region
          %s171 = sand.u32 %s35, 1
          %s172 = sand.u32 %s35, 1
          %s173 = smul.addr %s172, 32
          %s174 = scalar_lea.vmem [#allocation2], %s173
          %s175 = smul.u32 2, %s18
          %s176 = smul.u32 4, %s19
          %s177 = smul.addr %s175, 8
          %s178 = sadd.s32 %s176, %s177
          %s179 = smul.addr %s178, 4
          %s180 = scalar_lea.vmem %s0, %s179
          // Predicated region
          $region33: #{tpu_custom_call.1} parent=31 // pred_check
            _
          $region34: #{tpu_custom_call.1} parent=31 // pred_check_branch
            %182 = sbr.rel (0) target = $region36
          $region35: #{tpu_custom_call.1} parent=31 // pred_region
            // Predicated region
            $region37: #{tpu_custom_call.1} parent=35 // pred_check
              _
            $region38: #{tpu_custom_call.1} parent=35 // pred_check_branch
              %184 = sbr.rel target = $region40
            $region39: #{tpu_custom_call.1} parent=35 // pred_region
              // Predicated region
              $region52: #{tpu_custom_call.1} parent=39 // pred_check
                _
              $region53: #{tpu_custom_call.1} parent=39 // pred_check_branch
                %214 = sbr.rel (0) target = $region55
              $region54: #{tpu_custom_call.1} parent=39 // pred_region
                loop: start=0, step=1, limit=1
                $region56: #{tpu_custom_call.1} parent=54 // loop_pre_header
                  _
                $region57: #{tpu_custom_call.1} parent=54 // loop_header
                  %s216 = sphi 0, %s220
                  %p217 = scmp.ge.s32.totalorder %s216, 1
                  %s221 = sphi %s180, %s180
                  %s222 = sphi %s174, %s174
                $region58: #{tpu_custom_call.1} parent=54 // loop_header_branch
                  %219 = sbr.rel (%p217) target = $region62
                $region59: #{tpu_custom_call.1} parent=54 // loop_body
                  _
                $region60: #{tpu_custom_call.1} parent=54 // loop_footer
                  %s220 = sadd.s32 1, %s216
                $region61: #{tpu_custom_call.1} parent=54 // loop_footer_branch
                  %215 = sbr.rel target = $region57
                $region62: #{tpu_custom_call.1} parent=54 // loop_exit
                  _
                %s224 = ssub.s32 16, 1
                loop: start=0, step=1, limit=1
                $region63: #{tpu_custom_call.1} parent=54 // loop_pre_header
                  _
                $region64: #{tpu_custom_call.1} parent=54 // loop_header
                  %s226 = sphi 0, %s230
                  %p227 = scmp.ge.s32.totalorder %s226, 1
                  %s231 = sphi %s180, %s180
                  %s232 = sphi %s174, %s174
                $region65: #{tpu_custom_call.1} parent=54 // loop_header_branch
                  %229 = sbr.rel (%p227) target = $region69
                $region66: #{tpu_custom_call.1} parent=54 // loop_body
                  %v233 = vld [vmem:[%s231] sm:%s224]
                  %234 = vst [vmem:[%s232] sm:%s224] %v233
                  %v235 = vld [vmem:[%s231 + $0x4] sm:%s224]
                  %236 = vst [vmem:[%s232 + $0x4] sm:%s224] %v235
                  %v237 = vld [vmem:[%s231 + $0x8] sm:%s224]
                  %238 = vst [vmem:[%s232 + $0x8] sm:%s224] %v237
                  %v239 = vld [vmem:[%s231 + $0xc] sm:%s224]
                  %240 = vst [vmem:[%s232 + $0xc] sm:%s224] %v239
                  %v241 = vld [vmem:[%s231 + $0x20] sm:%s224]
                  %242 = vst [vmem:[%s232 + $0x10] sm:%s224] %v241
                  %v243 = vld [vmem:[%s231 + $0x24] sm:%s224]
                  %244 = vst [vmem:[%s232 + $0x14] sm:%s224] %v243
                  %v245 = vld [vmem:[%s231 + $0x28] sm:%s224]
                  %246 = vst [vmem:[%s232 + $0x18] sm:%s224] %v245
                  %v247 = vld [vmem:[%s231 + $0x2c] sm:%s224]
                  %248 = vst [vmem:[%s232 + $0x1c] sm:%s224] %v247
                $region67: #{tpu_custom_call.1} parent=54 // loop_footer
                  %s230 = sadd.s32 1, %s226
                $region68: #{tpu_custom_call.1} parent=54 // loop_footer_branch
                  %225 = sbr.rel target = $region64
                $region69: #{tpu_custom_call.1} parent=54 // loop_exit
                  _
              $region55: #{tpu_custom_call.1} parent=39 // pred_fallthru
                _
            $region40: #{tpu_custom_call.1} parent=35 // pred_fallthru
              _
            // Predicated region
            $region41: #{tpu_custom_call.1} parent=35 // pred_check
              _
            $region42: #{tpu_custom_call.1} parent=35 // pred_check_branch
              %186 = sbr.rel (0) target = $region44
            $region43: #{tpu_custom_call.1} parent=35 // pred_region
              %s188 = ssub.s32 16, 1
              loop: start=0, step=1, limit=1
              $region45: #{tpu_custom_call.1} parent=43 // loop_pre_header
                _
              $region46: #{tpu_custom_call.1} parent=43 // loop_header
                %s190 = sphi 0, %s194
                %p191 = scmp.ge.s32.totalorder %s190, 1
                %s195 = sphi %s180, %s180
                %s196 = sphi %s174, %s174
              $region47: #{tpu_custom_call.1} parent=43 // loop_header_branch
                %193 = sbr.rel (%p191) target = $region51
              $region48: #{tpu_custom_call.1} parent=43 // loop_body
                %v197 = vld [vmem:[%s195] sm:%s188]
                %198 = vst [vmem:[%s196] sm:%s188] %v197
                %v199 = vld [vmem:[%s195 + $0x4] sm:%s188]
                %200 = vst [vmem:[%s196 + $0x4] sm:%s188] %v199
                %v201 = vld [vmem:[%s195 + $0x8] sm:%s188]
                %202 = vst [vmem:[%s196 + $0x8] sm:%s188] %v201
                %v203 = vld [vmem:[%s195 + $0xc] sm:%s188]
                %204 = vst [vmem:[%s196 + $0xc] sm:%s188] %v203
                %v205 = vld [vmem:[%s195 + $0x20] sm:%s188]
                %206 = vst [vmem:[%s196 + $0x10] sm:%s188] %v205
                %v207 = vld [vmem:[%s195 + $0x24] sm:%s188]
                %208 = vst [vmem:[%s196 + $0x14] sm:%s188] %v207
                %v209 = vld [vmem:[%s195 + $0x28] sm:%s188]
                %210 = vst [vmem:[%s196 + $0x18] sm:%s188] %v209
                %v211 = vld [vmem:[%s195 + $0x2c] sm:%s188]
                %212 = vst [vmem:[%s196 + $0x1c] sm:%s188] %v211
              $region49: #{tpu_custom_call.1} parent=43 // loop_footer
                %s194 = sadd.s32 1, %s190
              $region50: #{tpu_custom_call.1} parent=43 // loop_footer_branch
                %189 = sbr.rel target = $region46
              $region51: #{tpu_custom_call.1} parent=43 // loop_exit
                _
            $region44: #{tpu_custom_call.1} parent=35 // pred_fallthru
              _
          $region36: #{tpu_custom_call.1} parent=31 // pred_fallthru
            _
          %249 = vnop
        $region32: #{tpu_custom_call.1} parent=27 // pred_fallthru
          _
      $region28: #{tpu_custom_call.1} parent=5 // pred_fallthru
        _
      %p250 = scmp.le.s32.totalorder 1, %s11
      %p251 = scmp.lt.s32.totalorder %s11, 3
      %p252 = pnand %p250, %p251
      %p253 = pneg %p252
      // Predicated region
      $region70: #{tpu_custom_call.1} parent=5 // pred_check
        _
      $region71: #{tpu_custom_call.1} parent=5 // pred_check_branch
        %255 = sbr.rel (%p252) target = $region73
      $region72: #{tpu_custom_call.1} parent=5 // pred_region
        %s256 = ssub.s32 %s11, 1
        %s257 = sand.u32 %s38, 1
        %s258 = sand.u32 %s38, 1
        %s259 = smul.addr %s258, 32
        %s260 = scalar_lea.vmem [#allocation2], %s259
        // Predicated region
        $region74: #{tpu_custom_call.1} parent=72 // pred_check
          %p261 = pneg %p51
        $region75: #{tpu_custom_call.1} parent=72 // pred_check_branch
          %263 = sbr.rel (%p261) target = $region77
        $region76: #{tpu_custom_call.1} parent=72 // pred_region
          _
        $region77: #{tpu_custom_call.1} parent=72 // pred_fallthru
          _
        %s264 = sand.u32 %s38, 1
        %s265 = sand.u32 %s38, 1
        %s266 = smul.addr %s265, 32
        %s267 = scalar_lea.vmem [#allocation2], %s266
        %p268 = pneg %p51
        %p269 = pneg %p48
        %p270 = pneg %p72
        %p271 = pneg %p69
        %p272 = pneg %p93
        %p273 = pneg %p90
        %p274 = pneg %p114
        %p275 = pneg %p111
        %p276 = pneg %p140
        %p277 = pneg %p137
        %s278 = smul.u32 2, %s20
        %s279 = smul.u32 4, %s21
        %v280 = vld [vmem:[%s260] sm:$0xf]
        %v281 = vld [vmem:[%s260 + $0x4] sm:$0xf]
        %v282 = vld [vmem:[%s260 + $0x8] sm:$0xf]
        %v283 = vld [vmem:[%s260 + $0xc] sm:$0xf]
        %v284 = vld [vmem:[%s260 + $0x10] sm:$0xf]
        %v285 = vld [vmem:[%s260 + $0x14] sm:$0xf]
        %v286 = vld [vmem:[%s260 + $0x18] sm:$0xf]
        %v287 = vld [vmem:[%s260 + $0x1c] sm:$0xf]
        %v288 = vld [vmem:[%s1] sm:$0xf]
        %v289 = vld [vmem:[%s1 + $0x4] sm:$0xf]
        %v290 = vld [vmem:[%s1 + $0x8] sm:$0xf]
        %v291 = vld [vmem:[%s1 + $0xc] sm:$0xf]
        %v292 = vld [vmem:[%s1 + $0x10] sm:$0xf]
        %v293 = vld [vmem:[%s1 + $0x14] sm:$0xf]
        %v294 = vld [vmem:[%s1 + $0x18] sm:$0xf]
        %v295 = vld [vmem:[%s1 + $0x1c] sm:$0xf]
        %v296 = vld [vmem:[%s1 + $0x20] sm:$0xf]
        %v297 = vld [vmem:[%s1 + $0x24] sm:$0xf]
        %v298 = vld [vmem:[%s1 + $0x28] sm:$0xf]
        %v299 = vld [vmem:[%s1 + $0x2c] sm:$0xf]
        %v300 = vld [vmem:[%s1 + $0x30] sm:$0xf]
        %v301 = vld [vmem:[%s1 + $0x34] sm:$0xf]
        %v302 = vld [vmem:[%s1 + $0x38] sm:$0xf]
        %v303 = vld [vmem:[%s1 + $0x3c] sm:$0xf]
        %v312 = vunpack.c.l.b16 %v280
        %v313 = vunpack.c.l.b16 %v281
        %v314 = vunpack.c.l.b16 %v282
        %v315 = vunpack.c.l.b16 %v283
        %v316 = vunpack.c.l.b16 %v284
        %v317 = vunpack.c.l.b16 %v285
        %v318 = vunpack.c.l.b16 %v286
        %v319 = vunpack.c.l.b16 %v287
        %v320 = vpack.c.b16 %v313, %v312
        %v321 = vpack.c.b16 %v315, %v314
        %v322 = vpack.c.b16 %v317, %v316
        %v323 = vpack.c.b16 %v319, %v318
        %v344 = vunpack.c.l.b16 %v288
        %v345 = vunpack.c.l.b16 %v289
        %v346 = vunpack.c.l.b16 %v290
        %v347 = vunpack.c.l.b16 %v291
        %v348 = vunpack.c.l.b16 %v292
        %v349 = vunpack.c.l.b16 %v293
        %v350 = vunpack.c.l.b16 %v294
        %v351 = vunpack.c.l.b16 %v295
        %v352 = vunpack.c.l.b16 %v296
        %v353 = vunpack.c.l.b16 %v297
        %v354 = vunpack.c.l.b16 %v298
        %v355 = vunpack.c.l.b16 %v299
        %v356 = vunpack.c.l.b16 %v300
        %v357 = vunpack.c.l.b16 %v301
        %v358 = vunpack.c.l.b16 %v302
        %v359 = vunpack.c.l.b16 %v303
        %v360 = vpack.c.b16 %v345, %v344
        %v361 = vpack.c.b16 %v347, %v346
        %v362 = vpack.c.b16 %v349, %v348
        %v363 = vpack.c.b16 %v351, %v350
        %v364 = vpack.c.b16 %v353, %v352
        %v365 = vpack.c.b16 %v355, %v354
        %v366 = vpack.c.b16 %v357, %v356
        %v367 = vpack.c.b16 %v359, %v358
        %376 = vmatpush.bf16.msra.mxu0 %v367
        %377 = vmatpush.bf16.msra.mxu0 %v366
        %378 = vmatpush.bf16.msra.mxu0 %v365
        %379 = vmatpush.bf16.msra.mxu0 %v364
        %380 = vmatpush.bf16.msra.mxu0 %v363
        %381 = vmatpush.bf16.msra.mxu0 %v362
        %382 = vmatpush.bf16.msra.mxu0 %v361
        %383 = vmatpush.bf16.msra.mxu0 %v360
        %384 = vmatmul.bf16.gmra.mxu0 %v320
        %v385 = vpop.f32.mrf.mxu0
        %v386 = vadd.f32 0.0, %v385
        %v387 = vpop.f32.mrf.mxu0
        %v388 = vadd.f32 0.0, %v387
        %389 = vmatmul.bf16.gmra.mxu0 %v321
        %v390 = vpop.f32.mrf.mxu0
        %v391 = vadd.f32 0.0, %v390
        %v392 = vpop.f32.mrf.mxu0
        %v393 = vadd.f32 0.0, %v392
        %394 = vmatmul.bf16.gmra.mxu0 %v322
        %v395 = vpop.f32.mrf.mxu0
        %v396 = vadd.f32 0.0, %v395
        %v397 = vpop.f32.mrf.mxu0
        %v398 = vadd.f32 0.0, %v397
        %399 = vmatmul.bf16.gmra.mxu0 %v323
        %v400 = vpop.f32.mrf.mxu0
        %v401 = vadd.f32 0.0, %v400
        %v402 = vpop.f32.mrf.mxu0
        %v403 = vadd.f32 0.0, %v402
        %404 = vdwg.mxu0
        %s405 = smul.u32 %s21, 32
        %v406 = vlaneseq
        %v407 = vshrl.u32 %v406, 7
        %v408 = vadd.s32 %v407, 8
        %v409 = vadd.s32 %v407, 16
        %v410 = vadd.s32 %v407, 24
        %v411 = vstv %s405
        %v412 = vadd.s32 %v411, %v407
        %v413 = vadd.s32 %v411, %v408
        %v414 = vadd.s32 %v411, %v409
        %v415 = vadd.s32 %v411, %v410
        %v416 = vld [vmem:[%s3] sm:$0x1]
        %v417 = vperm.slane %v416, 0
        %vm418 = vcmp.lt.s32.totalorder %v412, %v417
        %vm419 = vcmp.lt.s32.totalorder %v413, %v417
        %vm420 = vcmp.lt.s32.totalorder %v414, %v417
        %vm421 = vcmp.lt.s32.totalorder %v415, %v417
        %v422 = vsel %vm418, 1, 0
        %v423 = vsel %vm419, 1, 0
        %v424 = vsel %vm420, 1, 0
        %v425 = vsel %vm421, 1, 0
        %vm426 = vcmp.eq.s32.totalorder %v422, 1
        %vm427 = vcmp.eq.s32.totalorder %v423, 1
        %vm428 = vcmp.eq.s32.totalorder %v424, 1
        %vm429 = vcmp.eq.s32.totalorder %v425, 1
        %v430 = vsel %vm426, %v386, -inf
        %v431 = vsel %vm427, %v388, -inf
        %v432 = vsel %vm428, %v391, -inf
        %v433 = vsel %vm429, %v393, -inf
        %v434 = vsel %vm426, %v396, -inf
        %v435 = vsel %vm427, %v398, -inf
        %v436 = vsel %vm428, %v401, -inf
        %v437 = vsel %vm429, %v403, -inf
        %vm438 = vcmask 785408
        %v439 = vsel %vm438, %v430, -inf
        %v440 = vsel %vm438, %v431, -inf
        %v441 = vsel %vm438, %v432, -inf
        %v442 = vmax.f32 %v439, %v441
        %v443 = vsel %vm438, %v433, -inf
        %v444 = vmax.f32 %v440, %v443
        %v445 = vmax.f32 %v442, %v444
        %v446 = vrot.slane %v445, 4
        %v447 = vmax.f32 %v445, %v446
        %v448 = vrot.slane %v447, 2
        %v449 = vmax.f32 %v447, %v448
        %v450 = vrot.slane %v449, 1
        %v451 = vmax.f32 %v449, %v450
        %v452 = vsel %vm438, %v434, -inf
        %v453 = vsel %vm438, %v435, -inf
        %v454 = vsel %vm438, %v436, -inf
        %v455 = vmax.f32 %v452, %v454
        %v456 = vsel %vm438, %v437, -inf
        %v457 = vmax.f32 %v453, %v456
        %v458 = vmax.f32 %v455, %v457
        %v459 = vrot.slane %v458, 4
        %v460 = vmax.f32 %v458, %v459
        %v461 = vrot.slane %v460, 2
        %v462 = vmax.f32 %v460, %v461
        %v463 = vrot.slane %v462, 1
        %v464 = vmax.f32 %v462, %v463
        %p465 = scmp.eq.s32.totalorder %s21, 0
        // Predicated region
        $region78: #{tpu_custom_call.1} parent=72 // pred_check
          %p466 = pneg %p465
        $region79: #{tpu_custom_call.1} parent=72 // pred_check_branch
          %468 = sbr.rel (%p466) target = $region81
        $region80: #{tpu_custom_call.1} parent=72 // pred_region
          %vm471 = vcmask 1041409
          %v472 = vsel %vm471, %v464, %v451
          %vm474 = vcmask 779264
          %475 = vst.msk [vmem:[#allocation3] sm:$0x3] %vm474, %v472
        $region81: #{tpu_custom_call.1} parent=72 // pred_fallthru
          _
        %p476 = scmp.gt.s32.totalorder %s21, 0
        // Predicated region
        $region82: #{tpu_custom_call.1} parent=72 // pred_check
          %p477 = pneg %p476
        $region83: #{tpu_custom_call.1} parent=72 // pred_check_branch
          %479 = sbr.rel (%p477) target = $region85
        $region84: #{tpu_custom_call.1} parent=72 // pred_region
          %v480 = vld [vmem:[#allocation3] sm:$0x3]
          %vm483 = vcmask 1041409
          %v484 = vsel %vm483, %v464, %v451
          %v486 = vmax.f32 %v480, %v484
          %vm487 = vcmask 779264
          %488 = vst.msk [vmem:[#allocation3] sm:$0x3] %vm487, %v486
        $region85: #{tpu_custom_call.1} parent=72 // pred_fallthru
          _
        %p489 = scmp.eq.s32.totalorder %s21, 1
        // Predicated region
        $region86: #{tpu_custom_call.1} parent=72 // pred_check
          %p490 = pneg %p489
        $region87: #{tpu_custom_call.1} parent=72 // pred_check_branch
          %492 = sbr.rel (%p490) target = $region89
        $region88: #{tpu_custom_call.1} parent=72 // pred_region
          %v493 = vld [vmem:[#allocation3] sm:$0x3]
          %v494 = vld [vmem:[%s2] sm:$0x1]
          %v496 = vperm.slane %v494, 0
          %v498 = vadd.f32 %v493, %v496
          %vm499 = vcmask 779264
          %500 = vst.msk [vmem:[#allocation3] sm:$0x3] %vm499, %v498
        $region89: #{tpu_custom_call.1} parent=72 // pred_fallthru
          _
        // Predicated region
        $region90: #{tpu_custom_call.1} parent=72 // pred_check
          %p501 = pneg %p137
        $region91: #{tpu_custom_call.1} parent=72 // pred_check_branch
          %503 = sbr.rel (%p501) target = $region93
        $region92: #{tpu_custom_call.1} parent=72 // pred_region
          %505 = vsyncadd [#allocation4], 0
          %s506 = smul.addr %s20, 2
          %s507 = scalar_lea.hbm %s4, %s506
          %s509 = sshll.u32 [#allocation3], 4
          %s510 = int_to_ptr.vmem [resolvable:$true] %s509
          %s511 = sshll.u32 %s507, 4
          %s512 = int_to_ptr.hbm [resolvable:$true] %s511
          %514 = dma.vmem_to_hbm [thread:$0]  %s510, 32, %s512, [#allocation4]
        $region93: #{tpu_custom_call.1} parent=72 // pred_fallthru
          _
        // Predicated region
        $region94: #{tpu_custom_call.1} parent=72 // pred_check
          %p515 = pneg %p137
        $region95: #{tpu_custom_call.1} parent=72 // pred_check_branch
          %517 = sbr.rel (%p515) target = $region97
        $region96: #{tpu_custom_call.1} parent=72 // pred_region
          %519 = dma.done [#allocation4], 32
        $region97: #{tpu_custom_call.1} parent=72 // pred_fallthru
          _
      $region73: #{tpu_custom_call.1} parent=5 // pred_fallthru
        _
      %p520 = scmp.le.s32.totalorder 2, %s11
      // Predicated region
      $region98: #{tpu_custom_call.1} parent=5 // pred_check
        %p521 = pneg %p520
      $region99: #{tpu_custom_call.1} parent=5 // pred_check_branch
        %523 = sbr.rel (%p521) target = $region101
      $region100: #{tpu_custom_call.1} parent=5 // pred_region
        %s524 = ssub.s32 %s11, 2
      $region101: #{tpu_custom_call.1} parent=5 // pred_fallthru
        _
    $region6: #{tpu_custom_call.1} parent=1 // loop_footer
      %s15 = sadd.s32 1, %s11
    $region7: #{tpu_custom_call.1} parent=1 // loop_footer_branch
      %10 = sbr.rel target = $region3
    $region8: #{tpu_custom_call.1} parent=1 // loop_exit
      _
    %525 = vsyncpa [#allocation4], 1
    %s526 = scalar_lea.sflag [#allocation4], 1
    %527 = vsyncpa %s526, 1

</llo_original>
